<compile_context>
chip_gen: v7x
topology: tpu7x:2x2x1
jax: 0.10.0
libtpu: 0.0.40
codegen_flags: <defaults>
</compile_context>

<pallas_src>
import functools
import math

import jax
import jax.numpy as jnp
import numpy as np
from jax.experimental import pallas as pl
from jax.experimental.pallas import tpu as pltpu


# --------------------------------------------------------------------------
# Parameter / buffer setup (plain JAX glue): the `pe` buffer from __init__.
# --------------------------------------------------------------------------
def build_pe_table(d_model: int, max_len: int = 5000) -> jnp.ndarray:
    assert d_model % 2 == 0, "d_model must be even for 2D positional encoding"
    C = d_model // 2
    position = jnp.arange(max_len, dtype=jnp.float32)[:, None]          # (max_len, 1)
    div_term = jnp.exp(
        jnp.arange(0, d_model, 2, dtype=jnp.float32)
        * -(math.log(10000.0) / d_model)
    )                                                                    # (C,)
    angles = position * div_term                                         # (max_len, C)
    n_even = (C + 1) // 2   # number of columns in pe[:, 0::2]
    n_odd = C // 2          # number of columns in pe[:, 1::2]
    pe = jnp.zeros((max_len, C), dtype=jnp.float32)
    pe = pe.at[:, 0::2].set(jnp.sin(angles)[:, :n_even])
    pe = pe.at[:, 1::2].set(jnp.cos(angles)[:, :n_odd])
    return pe


# --------------------------------------------------------------------------
# Pallas kernels: pure broadcasted adds against zero-padded PE slabs.
# --------------------------------------------------------------------------
def _pe2d_add_3d_kernel(x_ref, pe_row_ref, pe_col_ref, o_ref):
    # x_ref:      (td1, dim_2, D)
    # pe_row_ref: (td1, D)    row-PE in [:, :C], zeros in [:, C:]
    # pe_col_ref: (dim_2, D)  zeros in [:, :C], col-PE in [:, C:]
    x = x_ref[...]
    p_row = pe_row_ref[...][:, None, :]     # broadcast over dim_2 (sublanes)
    p_col = pe_col_ref[...][None, :, :]     # broadcast over dim_1 tile
    o_ref[...] = (x + p_row + p_col).astype(o_ref.dtype)


def _pe2d_add_flat_kernel(x_ref, pe_row_ref, pe_col_ref, o_ref, *, dim_2):
    # x_ref:      (td1, dim_2*D)   lane-dense view (used when D < 128)
    # pe_row_ref: (td1, D)         row-PE in [:, :C], zeros in [:, C:]
    # pe_col_ref: (1, dim_2*D)     zeros in row-PE lanes, col-PE elsewhere
    x = x_ref[...]
    p_row = jnp.tile(pe_row_ref[...], (1, dim_2))   # (td1, dim_2*D), tiny operand
    p_col = pe_col_ref[...]
    o_ref[...] = (x + p_row + p_col).astype(o_ref.dtype)


# --------------------------------------------------------------------------
# Tiling heuristic: ~2 MiB blocks, sublane-aligned, >=2 grid steps if possible.
# --------------------------------------------------------------------------
def _choose_td1(dim_1: int, bytes_per_row: int, *,
                target_block_bytes: int = 2 << 20, min_grid_steps: int = 2) -> int:
    if dim_1 % 8 != 0:
        return dim_1  # tiny / odd dim_1: one block along dim_1 keeps layout simple
    cap = max(8, (target_block_bytes // max(1, bytes_per_row)) // 8 * 8)
    cap = min(cap, dim_1)
    if dim_1 // cap < min_grid_steps and dim_1 // 8 >= min_grid_steps:
        cap = max(8, (dim_1 // min_grid_steps) // 8 * 8)
    best = 8
    for d in range(8, min(cap, dim_1) + 1, 8):
        if dim_1 % d == 0:
            best = d
    return best


# --------------------------------------------------------------------------
# Forward pass of PositionalEncoding2D (eval mode: dropout = identity).
# --------------------------------------------------------------------------
def positional_encoding_2d(x, dim_1: int, dim_2: int, pe_table, *,
                           tile_d1=None, donate_x: bool = False):
    N, D = x.shape
    assert N == dim_1 * dim_2
    max_len, C = pe_table.shape
    assert D == 2 * C, "x.shape[1] must equal d_model"
    assert dim_1 <= max_len and dim_2 <= max_len, "dim_1/dim_2 exceed max_len"

    # Pre-cast PE when x is bf16 (bf16 VPU on v6e/v7x); keep f32 otherwise (v5e).
    pe_dtype = x.dtype if x.dtype == jnp.bfloat16 else jnp.float32
    pe_t = pe_table.astype(pe_dtype)
    pe_row_pad = jnp.concatenate(               # (dim_1, D): row-PE | zeros
        [pe_t[:dim_1], jnp.zeros((dim_1, C), pe_dtype)], axis=1)
    pe_col_pad = jnp.concatenate(               # (dim_2, D): zeros | col-PE
        [jnp.zeros((dim_2, C), pe_dtype), pe_t[:dim_2]], axis=1)

    itemsize = jnp.dtype(x.dtype).itemsize
    pe_itemsize = jnp.dtype(pe_dtype).itemsize
    cost = pl.CostEstimate(
        flops=2 * N * D,
        transcendentals=0,
        bytes_accessed=2 * N * D * itemsize + (dim_1 + dim_2) * D * pe_itemsize,
    )
    io_alias = {0: 0} if donate_x else {}
    cparams = pltpu.CompilerParams(dimension_semantics=("parallel",))

    if D % 128 != 0:
        # Lane-dense path: flatten (dim_2, D) into the lane axis.
        flatD = dim_2 * D
        x2 = x.reshape(dim_1, flatD)
        pe_col_flat = pe_col_pad.reshape(1, flatD)
        td1 = tile_d1 if tile_d1 is not None else _choose_td1(dim_1, flatD * itemsize)
        assert dim_1 % td1 == 0
        out = pl.pallas_call(
            functools.partial(_pe2d_add_flat_kernel, dim_2=dim_2),
            out_shape=jax.ShapeDtypeStruct((dim_1, flatD), x.dtype),
            grid_spec=pltpu.PrefetchScalarGridSpec(
                num_scalar_prefetch=0,
                grid=(dim_1 // td1,),
                in_specs=[
                    pl.BlockSpec((td1, flatD), lambda i: (i, 0)),
                    pl.BlockSpec((td1, D), lambda i: (i, 0)),
                    pl.BlockSpec((1, flatD), lambda i: (0, 0)),
                ],
                out_specs=pl.BlockSpec((td1, flatD), lambda i: (i, 0)),
            ),
            compiler_params=cparams,
            cost_estimate=cost,
            input_output_aliases=io_alias,
        )(x2, pe_row_pad, pe_col_flat)
        return out.reshape(N, D)

    # D is a multiple of 128: 3-D view keeps full-lane stores without flattening.
    x3 = x.reshape(dim_1, dim_2, D)
    td1 = tile_d1 if tile_d1 is not None else _choose_td1(dim_1, dim_2 * D * itemsize)
    assert dim_1 % td1 == 0
    out = pl.pallas_call(
        _pe2d_add_3d_kernel,
        out_shape=jax.ShapeDtypeStruct((dim_1, dim_2, D), x.dtype),
        grid_spec=pltpu.PrefetchScalarGridSpec(
            num_scalar_prefetch=0,
            grid=(dim_1 // td1,),
            in_specs=[
                pl.BlockSpec((td1, dim_2, D), lambda i: (i, 0, 0)),
                pl.BlockSpec((td1, D), lambda i: (i, 0)),
                pl.BlockSpec((dim_2, D), lambda i: (0, 0)),
            ],
            out_specs=pl.BlockSpec((td1, dim_2, D), lambda i: (i, 0, 0)),
        ),
        compiler_params=cparams,
        cost_estimate=cost,
        input_output_aliases=io_alias,
    )(x3, pe_row_pad, pe_col_pad)
    return out.reshape(N, D)


# --------------------------------------------------------------------------
# Pure-JAX reference (mirrors the intended PyTorch forward) for verification.
# --------------------------------------------------------------------------
def reference_forward(x, dim_1, dim_2, pe_table):
    C = pe_table.shape[1]
    pe_1 = jnp.repeat(pe_table[:dim_1][:, None, :], dim_2, axis=1).reshape(-1, C)
    pe_2 = jnp.tile(pe_table[:dim_2][None, :, :], (dim_1, 1, 1)).reshape(-1, C)
    pe = jnp.concatenate([pe_1, pe_2], axis=1)
    return (x.astype(jnp.float32) + pe).astype(x.dtype)


if __name__ == "__main__":
    max_len = 64  # small max_len >= max(dim_1, dim_2); buffer semantics unchanged
    key = jax.random.PRNGKey(0)

    # --- Test 1: D < 128 (flat lane-dense path), f32 ---
    d_model, dim_1, dim_2 = 32, 16, 16          # N = 256, D = 32, dim_2*D = 512 lanes
    pe_table = build_pe_table(d_model, max_len)
    x = jax.random.normal(key, (dim_1 * dim_2, d_model), dtype=jnp.float32)
    out = jax.block_until_ready(positional_encoding_2d(x, dim_1, dim_2, pe_table))
    ref = reference_forward(x, dim_1, dim_2, pe_table)
    np.testing.assert_allclose(np.asarray(out), np.asarray(ref), rtol=1e-6, atol=1e-6)

    # --- Test 2: same shapes, bf16 input (PE pre-cast to bf16 in the wrapper) ---
    x_bf = x.astype(jnp.bfloat16)
    out_bf = jax.block_until_ready(positional_encoding_2d(x_bf, dim_1, dim_2, pe_table))
    ref_bf = reference_forward(x_bf, dim_1, dim_2, pe_table)
    np.testing.assert_allclose(np.asarray(out_bf, dtype=np.float32),
                               np.asarray(ref_bf, dtype=np.float32),
                               rtol=2e-2, atol=1e-1)

    # --- Test 3: D % 128 == 0 (3-D path), f32 ---
    d_model2, d1b, d2b = 256, 16, 8             # N = 128, D = 256
    pe_table2 = build_pe_table(d_model2, max_len)
    x2 = jax.random.normal(jax.random.PRNGKey(1), (d1b * d2b, d_model2), dtype=jnp.float32)
    out2 = jax.block_until_ready(positional_encoding_2d(x2, d1b, d2b, pe_table2))
    ref2 = reference_forward(x2, d1b, d2b, pe_table2)
    np.testing.assert_allclose(np.asarray(out2), np.asarray(ref2), rtol=1e-6, atol=1e-6)

    print("KERNEL_OK")
</pallas_src>

<mosaic_0001>
module attributes {stable_mosaic.version = 11 : i64} {
  func.func @_pe2d_add_flat_kernel(%arg0: i32, %arg1: memref<8x512xf32, #tpu.memory_space<vmem>>, %arg2: memref<8x32xf32, #tpu.memory_space<vmem>>, %arg3: memref<1x512xf32, #tpu.memory_space<vmem>>, %arg4: memref<8x512xf32, #tpu.memory_space<vmem>>) attributes {dimension_semantics = [#tpu.dimension_semantics<parallel>], iteration_bounds = array<i64: 2>, scalar_prefetch = 0 : i64, scratch_operands = 0 : i64, tpu.core_type = #tpu.core_type<tc>, window_params = [{transform_indices = @transform_0, window_bounds = array<i64: 8, 512>}, {transform_indices = @transform_1, window_bounds = array<i64: 8, 32>}, {pipeline_mode = #tpu.pipeline_mode<synchronous>, transform_indices = @transform_2, window_bounds = array<i64: 1, 512>}, {transform_indices = @transform_3, window_bounds = array<i64: 8, 512>}]} {
    %c0 = arith.constant 0 : index
    %c0_0 = arith.constant 0 : index
    %0 = vector.load %arg1[%c0, %c0_0] : memref<8x512xf32, #tpu.memory_space<vmem>>, vector<8x512xf32>
    %c0_1 = arith.constant 0 : index
    %c0_2 = arith.constant 0 : index
    %1 = vector.load %arg2[%c0_1, %c0_2] : memref<8x32xf32, #tpu.memory_space<vmem>>, vector<8x32xf32>
    %2 = tpu.concatenate %1, %1, %1, %1, %1, %1, %1, %1, %1, %1, %1, %1, %1, %1, %1, %1 in 1 : vector<8x32xf32>, vector<8x32xf32>, vector<8x32xf32>, vector<8x32xf32>, vector<8x32xf32>, vector<8x32xf32>, vector<8x32xf32>, vector<8x32xf32>, vector<8x32xf32>, vector<8x32xf32>, vector<8x32xf32>, vector<8x32xf32>, vector<8x32xf32>, vector<8x32xf32>, vector<8x32xf32>, vector<8x32xf32> -> vector<8x512xf32>
    %c0_3 = arith.constant 0 : index
    %c0_4 = arith.constant 0 : index
    %3 = vector.load %arg3[%c0_3, %c0_4] : memref<1x512xf32, #tpu.memory_space<vmem>>, vector<1x512xf32>
    %4 = arith.addf %0, %2 : vector<8x512xf32>
    %5 = vector.broadcast %3 : vector<1x512xf32> to vector<8x512xf32>
    %6 = arith.addf %4, %5 : vector<8x512xf32>
    %c0_5 = arith.constant 0 : index
    %c0_6 = arith.constant 0 : index
    %7 = vector.load %arg4[%c0_5, %c0_6] : memref<8x512xf32, #tpu.memory_space<vmem>>, vector<8x512xf32>
    tpu.vector_store %arg4[%c0_5, %c0_6], %6 {strides = array<i32>} : memref<8x512xf32, #tpu.memory_space<vmem>>, vector<8x512xf32>,
    return
  }
  func.func @transform_0(%arg0: i32) -> (i32, i32) {
    %c0_i32 = arith.constant 0 : i32
    %c0_i32_0 = arith.constant 0 : i32
    return %arg0, %c0_i32 : i32, i32
  }
  func.func @transform_1(%arg0: i32) -> (i32, i32) {
    %c0_i32 = arith.constant 0 : i32
    %c0_i32_0 = arith.constant 0 : i32
    return %arg0, %c0_i32 : i32, i32
  }
  func.func @transform_2(%arg0: i32) -> (i32, i32) {
    %c0_i32 = arith.constant 0 : i32
    %c0_i32_0 = arith.constant 0 : i32
    %c0_i32_1 = arith.constant 0 : i32
    return %c0_i32, %c0_i32_0 : i32, i32
  }
  func.func @transform_3(%arg0: i32) -> (i32, i32) {
    %c0_i32 = arith.constant 0 : i32
    %c0_i32_0 = arith.constant 0 : i32
    return %arg0, %c0_i32 : i32, i32
  }
}

</mosaic_0001>

<llo_original>
// kernel: tpu_custom_call.1
$region0: #{tpu_custom_call.1}
  #allocation0 [shape = 'u32[]', space=smem, size = 0x4, offset = 0x4, fixed_abs, tag = 'smem constant byte address 0x4 - core index']
  #allocation1 [shape = 'u32[144,128]{1,0:T(1,128)}', space=vmem, size = 0x12000, scoped, tag = 'internal scratch']
  %s0 = inlined_call_operand.hbm [shape: f32[16,512], index: 0, kind: input, shape index: {}]
  %s1 = inlined_call_operand.hbm [shape: f32[16,32], index: 1, kind: input, shape index: {}]
  %s2 = inlined_call_operand.vmem [shape: f32[1,512], index: 2, kind: input, shape index: {}]
  %s3 = inlined_call_operand.hbm [shape: f32[16,512], index: 3, kind: output, shape index: {}]
  %s4 = sld [smem:[#allocation0]]
  $region53: #{tpu_custom_call.1} parent=0
    _
  %s6 = ssub.s32 1, %s4
  %s7 = scalar_select 0, %s6, %s4
  $region1: #{tpu_custom_call.1} parent=0
    #allocation2 [shape = 'u8[32768]{0}', space=vmem, size = 0x8000, scoped, tag = 'input window, operand 0']
    #allocation3 [shape = 's32[2]{0}', space=sflag, size = 0x8, scoped, tag = 'scoped memory for tpu_custom_call.1']
    #allocation4 [shape = 's32[2]{0}', space=sflag, size = 0x8, scoped, tag = 'scoped memory for tpu_custom_call.1']
    #allocation5 [shape = 'u8[8192]{0}', space=vmem, size = 0x2000, scoped, tag = 'input window, operand 1']
    #allocation6 [shape = 's32[2]{0}', space=sflag, size = 0x8, scoped, tag = 'scoped memory for tpu_custom_call.1']
    #allocation7 [shape = 'u8[32768]{0}', space=vmem, size = 0x8000, scoped, tag = 'output window, operand 0']
    %8 = vsyncpa [#allocation3], 0
    %s9 = scalar_lea.sflag [#allocation3], 1
    %10 = vsyncpa %s9, 0
    %11 = vsyncpa [#allocation6], 0
    %s12 = scalar_lea.sflag [#allocation6], 1
    %13 = vsyncpa %s12, 0
    %14 = vsyncpa [#allocation4], 0
    %s15 = scalar_lea.sflag [#allocation4], 1
    %16 = vsyncpa %s15, 0
    loop: start=0, step=1, limit=4
    $region2: #{tpu_custom_call.1} parent=1 // loop_pre_header
      _
    $region3: #{tpu_custom_call.1} parent=1 // loop_header
      %s18 = sphi 0, %s22
      %p19 = scmp.ge.s32.totalorder %s18, 4
      %s28 = sphi 0, %s30
      %s31 = sphi 0, %s28
      %s32 = sphi 0, %s31
      %s48 = sphi 0, %s32
      %s54 = sphi 0, %s56
      %s57 = sphi 0, %s54
      %s58 = sphi 0, %s57
      %s74 = sphi 0, %s58
      %s78 = sphi 0, %s78
      %s80 = sphi 0, %s78
      %s81 = sphi 0, %s80
      %s95 = sphi 0, %s81
      %s101 = sphi 0, %s103
      %s104 = sphi 0, %s101
      %s105 = sphi 0, %s104
      %s121 = sphi 0, %s105
    $region4: #{tpu_custom_call.1} parent=1 // loop_header_branch
      %21 = sbr.rel (%p19) target = $region8
    $region5: #{tpu_custom_call.1} parent=1 // loop_body
      %s23 = ssub.s32 %s18, 1
      %s24 = ssub.s32 %s18, 2
      %s25 = sadd.s32 %s18, 1
      %s26 = ssub.s32 %s18, %s25
      %p27 = scmp.eq.s32.totalorder %s26, 0
      %s29 = sadd.s32 %s28, 1
      %s30 = scalar_select %p27, %s28, %s29
      %p33 = pneg %p27
      %p34 = scmp.eq.s32.totalorder %s18, 1
      %p35 = por %p33, %p34
      %p36 = scmp.ne.s32.totalorder %s28, %s31
      %p37 = scmp.eq.s32.totalorder %s18, 0
      %p38 = por %p36, %p37
      %p39 = scmp.ne.s32.totalorder %s28, %s31
      %p40 = scmp.eq.s32.totalorder %s23, 1
      %p41 = por %p39, %p40
      %p42 = scmp.ne.s32.totalorder %s31, %s32
      %p43 = scmp.eq.s32.totalorder %s23, 0
      %p44 = por %p42, %p43
      %p45 = scmp.ne.s32.totalorder %s31, %s32
      %p46 = scmp.eq.s32.totalorder %s24, 1
      %p47 = por %p45, %p46
      %p49 = scmp.ne.s32.totalorder %s32, %s48
      %p50 = scmp.eq.s32.totalorder %s24, 0
      %p51 = por %p49, %p50
      %s52 = ssub.s32 %s18, %s25
      %p53 = scmp.eq.s32.totalorder %s52, 0
      %s55 = sadd.s32 %s54, 1
      %s56 = scalar_select %p53, %s54, %s55
      %p59 = pneg %p53
      %p60 = scmp.eq.s32.totalorder %s18, 1
      %p61 = por %p59, %p60
      %p62 = scmp.ne.s32.totalorder %s54, %s57
      %p63 = scmp.eq.s32.totalorder %s18, 0
      %p64 = por %p62, %p63
      %p65 = scmp.ne.s32.totalorder %s54, %s57
      %p66 = scmp.eq.s32.totalorder %s23, 1
      %p67 = por %p65, %p66
      %p68 = scmp.ne.s32.totalorder %s57, %s58
      %p69 = scmp.eq.s32.totalorder %s23, 0
      %p70 = por %p68, %p69
      %p71 = scmp.ne.s32.totalorder %s57, %s58
      %p72 = scmp.eq.s32.totalorder %s24, 1
      %p73 = por %p71, %p72
      %p75 = scmp.ne.s32.totalorder %s58, %s74
      %p76 = scmp.eq.s32.totalorder %s24, 0
      %p77 = por %p75, %p76
      %s79 = sadd.s32 %s78, 1
      %p82 = scmp.eq.s32.totalorder %s18, 1
      %p83 = scmp.ne.s32.totalorder %s78, %s80
      %p84 = scmp.eq.s32.totalorder %s18, 0
      %p85 = por %p83, %p84
      %p86 = scmp.ne.s32.totalorder %s78, %s80
      %p87 = scmp.eq.s32.totalorder %s23, 1
      %p88 = por %p86, %p87
      %p89 = scmp.ne.s32.totalorder %s80, %s81
      %p90 = scmp.eq.s32.totalorder %s23, 0
      %p91 = por %p89, %p90
      %p92 = scmp.ne.s32.totalorder %s80, %s81
      %p93 = scmp.eq.s32.totalorder %s24, 1
      %p94 = por %p92, %p93
      %p96 = scmp.ne.s32.totalorder %s81, %s95
      %p97 = scmp.eq.s32.totalorder %s24, 0
      %p98 = por %p96, %p97
      %s99 = ssub.s32 %s18, %s25
      %p100 = scmp.eq.s32.totalorder %s99, 0
      %s102 = sadd.s32 %s101, 1
      %s103 = scalar_select %p100, %s101, %s102
      %p106 = pneg %p100
      %p107 = scmp.eq.s32.totalorder %s18, 1
      %p108 = por %p106, %p107
      %p109 = scmp.ne.s32.totalorder %s101, %s104
      %p110 = scmp.eq.s32.totalorder %s18, 0
      %p111 = por %p109, %p110
      %p112 = scmp.ne.s32.totalorder %s101, %s104
      %p113 = scmp.eq.s32.totalorder %s23, 1
      %p114 = por %p112, %p113
      %p115 = scmp.ne.s32.totalorder %s104, %s105
      %p116 = scmp.eq.s32.totalorder %s23, 0
      %p117 = por %p115, %p116
      %p118 = scmp.ne.s32.totalorder %s104, %s105
      %p119 = scmp.eq.s32.totalorder %s24, 1
      %p120 = por %p118, %p119
      %p122 = scmp.ne.s32.totalorder %s105, %s121
      %p123 = scmp.eq.s32.totalorder %s24, 0
      %p124 = por %p122, %p123
      %p125 = scmp.le.s32.totalorder 1, %s18
      %p126 = scmp.lt.s32.totalorder %s18, 3
      %p127 = pnand %p125, %p126
      %p128 = pneg %p127
      // Predicated region
      $region9: #{tpu_custom_call.1} parent=5 // pred_check
        _
      $region10: #{tpu_custom_call.1} parent=5 // pred_check_branch
        %130 = sbr.rel (%p127) target = $region12
      $region11: #{tpu_custom_call.1} parent=5 // pred_region
        %s131 = ssub.s32 %s18, 1
        // Predicated region
        $region13: #{tpu_custom_call.1} parent=11 // pred_check
          %p132 = pneg %p91
        $region14: #{tpu_custom_call.1} parent=11 // pred_check_branch
          %134 = sbr.rel (%p132) target = $region16
        $region15: #{tpu_custom_call.1} parent=11 // pred_region
          _
        $region16: #{tpu_custom_call.1} parent=11 // pred_fallthru
          _
      $region12: #{tpu_custom_call.1} parent=5 // pred_fallthru
        _
      %p135 = scmp.lt.s32.totalorder %s18, 2
      // Predicated region
      $region17: #{tpu_custom_call.1} parent=5 // pred_check
        %p136 = pneg %p135
      $region18: #{tpu_custom_call.1} parent=5 // pred_check_branch
        %138 = sbr.rel (%p136) target = $region20
      $region19: #{tpu_custom_call.1} parent=5 // pred_region
        // Predicated region
        $region21: #{tpu_custom_call.1} parent=19 // pred_check
          %p139 = pneg %p38
        $region22: #{tpu_custom_call.1} parent=19 // pred_check_branch
          %141 = sbr.rel (%p139) target = $region24
        $region23: #{tpu_custom_call.1} parent=19 // pred_region
          %s142 = sand.u32 %s28, 1
          %s143 = scalar_lea.sflag [#allocation3], %s142
          %s144 = sand.u32 %s28, 1
          %s145 = smul.addr %s144, 32
          %s146 = scalar_lea.vmem [#allocation2], %s145
          %s148 = ssub.s32 512, 512
          %149 = vsyncadd %s143, %s148
          %s150 = smul.addr %s18, 4
          %s151 = smul.addr %s150, 128
          %s152 = scalar_lea.hbm %s0, %s151
          %s154 = sshll.u32 %s146, 4
          %s155 = int_to_ptr.vmem [resolvable:$true] %s154
          %157 = dma.hbm_to_vmem [thread:$0]  %s152, 512, %s155, %s143
        $region24: #{tpu_custom_call.1} parent=19 // pred_fallthru
          _
        // Predicated region
        $region25: #{tpu_custom_call.1} parent=19 // pred_check
          %p158 = pneg %p64
        $region26: #{tpu_custom_call.1} parent=19 // pred_check_branch
          %160 = sbr.rel (%p158) target = $region28
        $region27: #{tpu_custom_call.1} parent=19 // pred_region
          %s161 = sand.u32 %s54, 1
          %s162 = scalar_lea.sflag [#allocation6], %s161
          %s163 = sand.u32 %s54, 1
          %s164 = smul.addr %s163, 8
          %s165 = scalar_lea.vmem [#allocation5], %s164
          %s167 = ssub.s32 128, 128
          %168 = vsyncadd %s162, %s167
          %s169 = smul.addr %s18, 128
          %s170 = scalar_lea.hbm %s1, %s169
          %s172 = sshll.u32 %s165, 4
          %s173 = int_to_ptr.vmem [resolvable:$true] %s172
          %175 = dma.hbm_to_vmem [thread:$0]  %s170, 128, %s173, %s162
        $region28: #{tpu_custom_call.1} parent=19 // pred_fallthru
          _
      $region20: #{tpu_custom_call.1} parent=5 // pred_fallthru
        _
      %p176 = scmp.le.s32.totalorder 1, %s18
      %p177 = scmp.lt.s32.totalorder %s18, 3
      %p178 = pnand %p176, %p177
      %p179 = pneg %p178
      // Predicated region
      $region29: #{tpu_custom_call.1} parent=5 // pred_check
        _
      $region30: #{tpu_custom_call.1} parent=5 // pred_check_branch
        %181 = sbr.rel (%p178) target = $region32
      $region31: #{tpu_custom_call.1} parent=5 // pred_region
        %s182 = ssub.s32 %s18, 1
        %s183 = sand.u32 %s31, 1
        %s184 = scalar_lea.sflag [#allocation3], %s183
        %s185 = sand.u32 %s31, 1
        %s186 = smul.addr %s185, 32
        %s187 = scalar_lea.vmem [#allocation2], %s186
        // Predicated region
        $region33: #{tpu_custom_call.1} parent=31 // pred_check
          %p188 = pneg %p44
        $region34: #{tpu_custom_call.1} parent=31 // pred_check_branch
          %190 = sbr.rel (%p188) target = $region36
        $region35: #{tpu_custom_call.1} parent=31 // pred_region
          %191 = dma.done %s184, 512
        $region36: #{tpu_custom_call.1} parent=31 // pred_fallthru
          _
        %s192 = sand.u32 %s57, 1
        %s193 = scalar_lea.sflag [#allocation6], %s192
        %s194 = sand.u32 %s57, 1
        %s195 = smul.addr %s194, 8
        %s196 = scalar_lea.vmem [#allocation5], %s195
        // Predicated region
        $region37: #{tpu_custom_call.1} parent=31 // pred_check
          %p197 = pneg %p70
        $region38: #{tpu_custom_call.1} parent=31 // pred_check_branch
          %199 = sbr.rel (%p197) target = $region40
        $region39: #{tpu_custom_call.1} parent=31 // pred_region
          %200 = dma.done %s193, 128
        $region40: #{tpu_custom_call.1} parent=31 // pred_fallthru
          _
        %s201 = sand.u32 %s31, 1
        %s202 = scalar_lea.sflag [#allocation3], %s201
        %s203 = sand.u32 %s31, 1
        %s204 = smul.addr %s203, 32
        %s205 = scalar_lea.vmem [#allocation2], %s204
        %p206 = pneg %p44
        %p207 = pneg %p41
        %s208 = sand.u32 %s57, 1
        %s209 = scalar_lea.sflag [#allocation6], %s208
        %s210 = sand.u32 %s57, 1
        %s211 = smul.addr %s210, 8
        %s212 = scalar_lea.vmem [#allocation5], %s211
        %p213 = pneg %p70
        %p214 = pneg %p67
        %p215 = pneg %p91
        %p216 = pneg %p88
        %p217 = pneg %p117
        %p218 = pneg %p114
        %s219 = sand.u32 %s104, 1
        %s220 = scalar_lea.sflag [#allocation4], %s219
        %s221 = sand.u32 %s104, 1
        %s222 = smul.addr %s221, 32
        %s223 = scalar_lea.vmem [#allocation7], %s222
        %v224 = vld [vmem:[%s187] sm:$0xff]
        %v225 = vld [vmem:[%s187 + $0x8] sm:$0xff]
        %v226 = vld [vmem:[%s187 + $0x10] sm:$0xff]
        %v227 = vld [vmem:[%s187 + $0x18] sm:$0xff]
        %v228 = vld [vmem:[%s196] sm:$0xff]
        %230 = vrot.lane.b32.xlu0 %v228, 32
        %v231 = vpop.permute.xlu0 %230
        %233 = vrot.lane.b32.xlu0 %v228, 64
        %v234 = vpop.permute.xlu0 %233
        %236 = vrot.lane.b32.xlu0 %v228, 96
        %v237 = vpop.permute.xlu0 %236
        %vm239 = vcmask 261120
        %v240 = vsel %vm239, %v228, %v231
        %vm241 = vcmask 523264
        %v242 = vsel %vm241, %v240, %v234
        %vm243 = vcmask 785408
        %v244 = vsel %vm243, %v242, %v237
        %v245 = vld [vmem:[%s2] sm:$0xf]
        %v246 = vadd.f32 %v224, %v244
        %v247 = vadd.f32 %v225, %v244
        %v248 = vadd.f32 %v226, %v244
        %v249 = vadd.f32 %v227, %v244
        %v251 = vlaneseq
        %v252 = vshrl.u32 %v251, 7
        %v253 = vsub.s32 0, %v252
        %v254 = vrot.slane %v245, %v253
        %v255 = vlaneseq
        %v256 = vshrl.u32 %v255, 7
        %v257 = vsub.s32 1, %v256
        %v258 = vrot.slane %v245, %v257
        %v259 = vlaneseq
        %v260 = vshrl.u32 %v259, 7
        %v261 = vsub.s32 2, %v260
        %v262 = vrot.slane %v245, %v261
        %v263 = vlaneseq
        %v264 = vshrl.u32 %v263, 7
        %v265 = vsub.s32 3, %v264
        %v266 = vrot.slane %v245, %v265
        %v271 = vadd.f32 %v246, %v254
        %v272 = vadd.f32 %v247, %v258
        %v273 = vadd.f32 %v248, %v262
        %v274 = vadd.f32 %v249, %v266
        %275 = vst [vmem:[%s223] sm:$0xff] %v271
        %276 = vst [vmem:[%s223 + $0x8] sm:$0xff] %v272
        %277 = vst [vmem:[%s223 + $0x10] sm:$0xff] %v273
        %278 = vst [vmem:[%s223 + $0x18] sm:$0xff] %v274
        %s279 = sand.u32 %s104, 1
        %s280 = scalar_lea.sflag [#allocation4], %s279
        %s281 = sand.u32 %s104, 1
        %s282 = smul.addr %s281, 32
        %s283 = scalar_lea.vmem [#allocation7], %s282
        // Predicated region
        $region41: #{tpu_custom_call.1} parent=31 // pred_check
          %p284 = pneg %p114
        $region42: #{tpu_custom_call.1} parent=31 // pred_check_branch
          %286 = sbr.rel (%p284) target = $region44
        $region43: #{tpu_custom_call.1} parent=31 // pred_region
          %s288 = ssub.s32 512, 512
          %289 = vsyncadd %s280, %s288
          %s290 = smul.addr %s23, 4
          %s291 = smul.addr %s290, 128
          %s292 = scalar_lea.hbm %s3, %s291
          %s294 = sshll.u32 %s283, 4
          %s295 = int_to_ptr.vmem [resolvable:$true] %s294
          %297 = dma.vmem_to_hbm [thread:$0]  %s295, 512, %s292, %s280
        $region44: #{tpu_custom_call.1} parent=31 // pred_fallthru
          _
      $region32: #{tpu_custom_call.1} parent=5 // pred_fallthru
        _
      %p298 = scmp.le.s32.totalorder 2, %s18
      // Predicated region
      $region45: #{tpu_custom_call.1} parent=5 // pred_check
        %p299 = pneg %p298
      $region46: #{tpu_custom_call.1} parent=5 // pred_check_branch
        %301 = sbr.rel (%p299) target = $region48
      $region47: #{tpu_custom_call.1} parent=5 // pred_region
        %s302 = ssub.s32 %s18, 2
        // Predicated region
        $region49: #{tpu_custom_call.1} parent=47 // pred_check
          %p303 = pneg %p120
        $region50: #{tpu_custom_call.1} parent=47 // pred_check_branch
          %305 = sbr.rel (%p303) target = $region52
        $region51: #{tpu_custom_call.1} parent=47 // pred_region
          %s306 = sand.u32 %s105, 1
          %s307 = scalar_lea.sflag [#allocation4], %s306
          %s308 = sand.u32 %s105, 1
          %s309 = smul.addr %s308, 32
          %s310 = scalar_lea.vmem [#allocation7], %s309
          %311 = dma.done %s307, 512
        $region52: #{tpu_custom_call.1} parent=47 // pred_fallthru
          _
      $region48: #{tpu_custom_call.1} parent=5 // pred_fallthru
        _
    $region6: #{tpu_custom_call.1} parent=1 // loop_footer
      %s22 = sadd.s32 1, %s18
    $region7: #{tpu_custom_call.1} parent=1 // loop_footer_branch
      %17 = sbr.rel target = $region3
    $region8: #{tpu_custom_call.1} parent=1 // loop_exit
      _
    %312 = vsyncpa [#allocation3], 1
    %s313 = scalar_lea.sflag [#allocation3], 1
    %314 = vsyncpa %s313, 1
    %315 = vsyncpa [#allocation6], 1
    %s316 = scalar_lea.sflag [#allocation6], 1
    %317 = vsyncpa %s316, 1
    %318 = vsyncpa [#allocation4], 1
    %s319 = scalar_lea.sflag [#allocation4], 1
    %320 = vsyncpa %s319, 1

</llo_original>
